<compile_context>
chip_gen: v7x
topology: tpu7x:2x2x1
jax: 0.10.0
libtpu: 0.0.40
codegen_flags: <defaults>
</compile_context>

<pallas_src>
import math

import jax
import jax.numpy as jnp
from jax.experimental import pallas as pl
from jax.experimental.pallas import tpu as pltpu


# --------------------------------------------------------------------------- #
# Pallas kernel:
#   o_tile = x_tile @ W_org^T + (x_tile @ W_down^T) @ (gain * W_up^T) + bias
# All matmuls accumulate in f32 on the MXU; gain is pre-folded into wu.
# --------------------------------------------------------------------------- #
def _lora_linear_kernel(x_ref, w_ref, wd_ref, wu_ref, b_ref, o_ref):
    x = x_ref[...]
    # main branch
    acc = jnp.dot(x, w_ref[...], preferred_element_type=jnp.float32)
    # LoRA branch (rank padded to 128 lanes; zero columns/rows contribute 0)
    down = jnp.dot(x, wd_ref[...], preferred_element_type=jnp.float32)
    acc += jnp.dot(down.astype(x.dtype), wu_ref[...],
                   preferred_element_type=jnp.float32)
    o_ref[...] = (acc + b_ref[...]).astype(o_ref.dtype)


# --------------------------------------------------------------------------- #
# Wrapper: transpose to (K,N)/(K,R)/(R,N), pad to lane multiples, tile rows.
# --------------------------------------------------------------------------- #
def lora_linear_forward(x, w_org, b_org, w_down, w_up, *, scale, multiplier,
                        tm_max=512):
    """x: (..., in_features). Weights in PyTorch layout:
       w_org (out, in), b_org (out,), w_down (r, in), w_up (out, r)."""
    orig_shape = x.shape
    K = orig_shape[-1]                       # in_features
    M = math.prod(orig_shape[:-1])           # flattened rows
    N = w_org.shape[0]                       # out_features
    R = w_down.shape[0]                      # lora rank

    gain = float(scale) * float(multiplier)  # trace-time constant
    dt = x.dtype

    w_t = w_org.T.astype(dt)                 # (K, N)
    wd_t = w_down.T.astype(dt)               # (K, R)
    wu_t = (gain * w_up.T).astype(dt)        # (R, N)  -- gain folded in (tiny)
    b_row = b_org.reshape(1, N).astype(jnp.float32)

    # ---- lane-dense padding: K, N, R up to multiples of 128 ----
    LANE = 128
    K_pad = pl.cdiv(K, LANE) * LANE
    N_pad = pl.cdiv(N, LANE) * LANE
    R_pad = pl.cdiv(R, LANE) * LANE

    x2 = x.reshape(M, K)
    if K_pad != K:
        x2 = jnp.pad(x2, ((0, 0), (0, K_pad - K)))
        w_t = jnp.pad(w_t, ((0, K_pad - K), (0, 0)))
        wd_t = jnp.pad(wd_t, ((0, K_pad - K), (0, 0)))
    if N_pad != N:
        w_t = jnp.pad(w_t, ((0, 0), (0, N_pad - N)))
        wu_t = jnp.pad(wu_t, ((0, 0), (0, N_pad - N)))
        b_row = jnp.pad(b_row, ((0, 0), (0, N_pad - N)))
    if R_pad != R:
        wd_t = jnp.pad(wd_t, ((0, 0), (0, R_pad - R)))
        wu_t = jnp.pad(wu_t, ((0, R_pad - R), (0, 0)))

    # ---- row tile: large, VMEM-budgeted, multiple of 8, >= 2 grid steps ----
    itemsize = jnp.dtype(dt).itemsize
    vmem_budget = 40 * 1024 * 1024                       # safe on v5e/v6e/v7x
    fixed_bytes = (2 * (K_pad * N_pad + K_pad * R_pad + R_pad * N_pad) * itemsize
                   + 2 * N_pad * 4)                      # resident weights + f32 bias
    per_row_bytes = 2 * (K_pad + N_pad) * itemsize       # dbl-buffered x/out rows
    rows_fit = max(8, (vmem_budget - fixed_bytes) // per_row_bytes)
    # TODO(synk): add a K/N reduction grid axis for weights too large for VMEM.

    tm = min(tm_max, int(rows_fit))
    tm = max(8, (tm // 8) * 8)

    rows8 = pl.cdiv(M, 8) * 8
    if rows8 >= 16:
        # keep at least 2 grid steps so megacore / both v7x TCs get work
        tm = min(tm, pl.cdiv(rows8, 16) * 8)
    else:
        tm = min(tm, rows8)

    M_pad = pl.cdiv(M, tm) * tm
    if M_pad != M:
        x2 = jnp.pad(x2, ((0, M_pad - M), (0, 0)))

    out_flat = pl.pallas_call(
        _lora_linear_kernel,
        out_shape=jax.ShapeDtypeStruct((M_pad, N_pad), dt),
        grid_spec=pl.GridSpec(
            grid=(M_pad // tm,),
            in_specs=[
                pl.BlockSpec((tm, K_pad), lambda i: (i, 0)),       # x row tile
                pl.BlockSpec((K_pad, N_pad), lambda i: (0, 0)),    # W_org^T (resident)
                pl.BlockSpec((K_pad, R_pad), lambda i: (0, 0)),    # W_down^T (resident)
                pl.BlockSpec((R_pad, N_pad), lambda i: (0, 0)),    # gain*W_up^T (resident)
                pl.BlockSpec((1, N_pad), lambda i: (0, 0)),        # bias (resident)
            ],
            out_specs=pl.BlockSpec((tm, N_pad), lambda i: (i, 0)),
        ),
        compiler_params=pltpu.CompilerParams(
            dimension_semantics=("parallel",),
            vmem_limit_bytes=48 * 1024 * 1024,
        ),
    )(x2, w_t, wd_t, wu_t, b_row)

    out = out_flat[:M, :N]
    return out.reshape(orig_shape[:-1] + (N,))


# --------------------------------------------------------------------------- #
# Pure-JAX reference (unfused, mirrors the PyTorch module exactly)
# --------------------------------------------------------------------------- #
def lora_linear_reference(x, w_org, b_org, w_down, w_up, *, scale, multiplier):
    org = jnp.dot(x, w_org.T) + b_org
    down = jnp.dot(x, w_down.T)
    up = jnp.dot(down, w_up.T)
    return up * scale * multiplier + org


# --------------------------------------------------------------------------- #
if __name__ == "__main__":
    # Small shapes consistent with the module: loraLinear wrapping nn.Linear.
    batch, seq = 2, 8
    in_features = 32
    out_features = 32
    lora_dim = 4
    alpha = 4.0
    multiplier = 1.0
    scale = alpha / lora_dim

    key = jax.random.PRNGKey(0)
    kx, ko, kb, kd, ku = jax.random.split(key, 5)

    x = jax.random.normal(kx, (batch, seq, in_features), dtype=jnp.float32)

    # Parameter init (shapes per the module's __init__):
    #   org_module : nn.Linear(in_features, out_features, bias=True)
    #   down_linear: nn.Linear(in_features, lora_dim, bias=False), kaiming-uniform
    #   up_linear  : nn.Linear(lora_dim, out_features, bias=False)
    # NOTE: the PyTorch module zero-inits up_linear; here we use small random
    # values so the LoRA branch is actually exercised numerically.
    bound = 1.0 / math.sqrt(in_features)
    w_org = jax.random.uniform(ko, (out_features, in_features), jnp.float32,
                               -bound, bound)
    b_org = jax.random.uniform(kb, (out_features,), jnp.float32, -bound, bound)
    # kaiming_uniform_(a=sqrt(5)) bound = sqrt(6/((1+5)*fan_in)) = 1/sqrt(fan_in)
    w_down = jax.random.uniform(kd, (lora_dim, in_features), jnp.float32,
                                -bound, bound)
    w_up = 0.02 * jax.random.normal(ku, (out_features, lora_dim), jnp.float32)

    out = lora_linear_forward(x, w_org, b_org, w_down, w_up,
                              scale=scale, multiplier=multiplier)
    out = jax.block_until_ready(out)

    ref = lora_linear_reference(x, w_org, b_org, w_down, w_up,
                                scale=scale, multiplier=multiplier)
    assert out.shape == (batch, seq, out_features), out.shape
    assert jnp.allclose(out, ref, rtol=1e-4, atol=1e-4), \
        float(jnp.max(jnp.abs(out - ref)))

    print("KERNEL_OK")
</pallas_src>

<mosaic_0001>
module attributes {stable_mosaic.version = 11 : i64} {
  func.func @_lora_linear_kernel(%arg0: i32, %arg1: memref<8x128xf32, #tpu.memory_space<vmem>>, %arg2: memref<128x128xf32, #tpu.memory_space<vmem>>, %arg3: memref<128x128xf32, #tpu.memory_space<vmem>>, %arg4: memref<128x128xf32, #tpu.memory_space<vmem>>, %arg5: memref<1x128xf32, #tpu.memory_space<vmem>>, %arg6: memref<8x128xf32, #tpu.memory_space<vmem>>) attributes {dimension_semantics = [#tpu.dimension_semantics<parallel>], iteration_bounds = array<i64: 2>, scalar_prefetch = 0 : i64, scratch_operands = 0 : i64, tpu.core_type = #tpu.core_type<tc>, window_params = [{transform_indices = @transform_0, window_bounds = array<i64: 8, 128>}, {pipeline_mode = #tpu.pipeline_mode<synchronous>, transform_indices = @transform_1, window_bounds = array<i64: 128, 128>}, {pipeline_mode = #tpu.pipeline_mode<synchronous>, transform_indices = @transform_2, window_bounds = array<i64: 128, 128>}, {pipeline_mode = #tpu.pipeline_mode<synchronous>, transform_indices = @transform_3, window_bounds = array<i64: 128, 128>}, {pipeline_mode = #tpu.pipeline_mode<synchronous>, transform_indices = @transform_4, window_bounds = array<i64: 1, 128>}, {transform_indices = @transform_5, window_bounds = array<i64: 8, 128>}]} {
    %c0 = arith.constant 0 : index
    %c0_0 = arith.constant 0 : index
    %0 = vector.load %arg1[%c0, %c0_0] : memref<8x128xf32, #tpu.memory_space<vmem>>, vector<8x128xf32>
    %c0_1 = arith.constant 0 : index
    %c0_2 = arith.constant 0 : index
    %1 = vector.load %arg2[%c0_1, %c0_2] : memref<128x128xf32, #tpu.memory_space<vmem>>, vector<128x128xf32>
    %cst = arith.constant dense<0.000000e+00> : vector<8x128xf32>
    %2 = tpu.matmul %0, %1, %cst {dimension_numbers = #tpu.dot_dimension_numbers<[1], [0], [0], [1], [0, 0, 1, 1], [], []>} : vector<8x128xf32>, vector<128x128xf32>, vector<8x128xf32> -> vector<8x128xf32>
    %c0_3 = arith.constant 0 : index
    %c0_4 = arith.constant 0 : index
    %3 = vector.load %arg3[%c0_3, %c0_4] : memref<128x128xf32, #tpu.memory_space<vmem>>, vector<128x128xf32>
    %cst_5 = arith.constant dense<0.000000e+00> : vector<8x128xf32>
    %4 = tpu.matmul %0, %3, %cst_5 {dimension_numbers = #tpu.dot_dimension_numbers<[1], [0], [0], [1], [0, 0, 1, 1], [], []>} : vector<8x128xf32>, vector<128x128xf32>, vector<8x128xf32> -> vector<8x128xf32>
    %c0_6 = arith.constant 0 : index
    %c0_7 = arith.constant 0 : index
    %5 = vector.load %arg4[%c0_6, %c0_7] : memref<128x128xf32, #tpu.memory_space<vmem>>, vector<128x128xf32>
    %cst_8 = arith.constant dense<0.000000e+00> : vector<8x128xf32>
    %6 = tpu.matmul %4, %5, %cst_8 {dimension_numbers = #tpu.dot_dimension_numbers<[1], [0], [0], [1], [0, 0, 1, 1], [], []>} : vector<8x128xf32>, vector<128x128xf32>, vector<8x128xf32> -> vector<8x128xf32>
    %7 = arith.addf %2, %6 : vector<8x128xf32>
    %c0_9 = arith.constant 0 : index
    %c0_10 = arith.constant 0 : index
    %8 = vector.load %arg5[%c0_9, %c0_10] : memref<1x128xf32, #tpu.memory_space<vmem>>, vector<1x128xf32>
    %9 = vector.broadcast %8 : vector<1x128xf32> to vector<8x128xf32>
    %10 = arith.addf %7, %9 : vector<8x128xf32>
    %c0_11 = arith.constant 0 : index
    %c0_12 = arith.constant 0 : index
    %11 = vector.load %arg6[%c0_11, %c0_12] : memref<8x128xf32, #tpu.memory_space<vmem>>, vector<8x128xf32>
    tpu.vector_store %arg6[%c0_11, %c0_12], %10 {strides = array<i32>} : memref<8x128xf32, #tpu.memory_space<vmem>>, vector<8x128xf32>,
    return
  }
  func.func @transform_0(%arg0: i32) -> (i32, i32) {
    %c0_i32 = arith.constant 0 : i32
    %c0_i32_0 = arith.constant 0 : i32
    return %arg0, %c0_i32 : i32, i32
  }
  func.func @transform_1(%arg0: i32) -> (i32, i32) {
    %c0_i32 = arith.constant 0 : i32
    %c0_i32_0 = arith.constant 0 : i32
    %c0_i32_1 = arith.constant 0 : i32
    return %c0_i32, %c0_i32_0 : i32, i32
  }
  func.func @transform_2(%arg0: i32) -> (i32, i32) {
    %c0_i32 = arith.constant 0 : i32
    %c0_i32_0 = arith.constant 0 : i32
    %c0_i32_1 = arith.constant 0 : i32
    return %c0_i32, %c0_i32_0 : i32, i32
  }
  func.func @transform_3(%arg0: i32) -> (i32, i32) {
    %c0_i32 = arith.constant 0 : i32
    %c0_i32_0 = arith.constant 0 : i32
    %c0_i32_1 = arith.constant 0 : i32
    return %c0_i32, %c0_i32_0 : i32, i32
  }
  func.func @transform_4(%arg0: i32) -> (i32, i32) {
    %c0_i32 = arith.constant 0 : i32
    %c0_i32_0 = arith.constant 0 : i32
    %c0_i32_1 = arith.constant 0 : i32
    return %c0_i32, %c0_i32_0 : i32, i32
  }
  func.func @transform_5(%arg0: i32) -> (i32, i32) {
    %c0_i32 = arith.constant 0 : i32
    %c0_i32_0 = arith.constant 0 : i32
    return %arg0, %c0_i32 : i32, i32
  }
}

</mosaic_0001>

<llo_original>
// kernel: tpu_custom_call.1
$region0: #{tpu_custom_call.1}
  #allocation0 [shape = 'u32[]', space=smem, size = 0x4, offset = 0x4, fixed_abs, tag = 'smem constant byte address 0x4 - core index']
  #allocation1 [shape = 'u32[144,128]{1,0:T(1,128)}', space=vmem, size = 0x12000, scoped, tag = 'internal scratch']
  %s0 = inlined_call_operand.hbm [shape: f32[16,128], index: 0, kind: input, shape index: {}]
  %s1 = inlined_call_operand.hbm [shape: f32[128,128], index: 1, kind: input, shape index: {}]
  %s2 = inlined_call_operand.hbm [shape: f32[128,128], index: 2, kind: input, shape index: {}]
  %s3 = inlined_call_operand.hbm [shape: f32[128,128], index: 3, kind: input, shape index: {}]
  %s4 = inlined_call_operand.vmem [shape: f32[1,128], index: 4, kind: input, shape index: {}]
  %s5 = inlined_call_operand.hbm [shape: f32[16,128], index: 5, kind: output, shape index: {}]
  %s6 = sld [smem:[#allocation0]]
  $region69: #{tpu_custom_call.1} parent=0
    _
  %s8 = ssub.s32 1, %s6
  %s9 = scalar_select 0, %s8, %s6
  $region1: #{tpu_custom_call.1} parent=0
    #allocation2 [shape = 'u8[8192]{0}', space=vmem, size = 0x2000, scoped, tag = 'input window, operand 0']
    #allocation3 [shape = 's32[2]{0}', space=sflag, size = 0x8, scoped, tag = 'scoped memory for tpu_custom_call.1']
    #allocation4 [shape = 's32[2]{0}', space=sflag, size = 0x8, scoped, tag = 'scoped memory for tpu_custom_call.1']
    #allocation5 [shape = 'u8[65536]{0}', space=vmem, size = 0x10000, scoped, tag = 'input window, operand 1, single buffered']
    #allocation6 [shape = 's32[1]{0}', space=sflag, size = 0x4, scoped, tag = 'scoped memory for tpu_custom_call.1']
    #allocation7 [shape = 'u8[65536]{0}', space=vmem, size = 0x10000, scoped, tag = 'input window, operand 2, single buffered']
    #allocation8 [shape = 'u8[65536]{0}', space=vmem, size = 0x10000, scoped, tag = 'input window, operand 3, single buffered']
    #allocation9 [shape = 's32[1]{0}', space=sflag, size = 0x4, scoped, tag = 'scoped memory for tpu_custom_call.1']
    #allocation10 [shape = 'u8[8192]{0}', space=vmem, size = 0x2000, scoped, tag = 'output window, operand 0']
    %10 = vsyncpa [#allocation3], 0
    %s11 = scalar_lea.sflag [#allocation3], 1
    %12 = vsyncpa %s11, 0
    %13 = vsyncpa [#allocation6], 0
    %14 = vsyncpa [#allocation9], 0
    %15 = vsyncpa [#allocation4], 0
    %s16 = scalar_lea.sflag [#allocation4], 1
    %17 = vsyncpa %s16, 0
    loop: start=0, step=1, limit=4
    $region2: #{tpu_custom_call.1} parent=1 // loop_pre_header
      _
    $region3: #{tpu_custom_call.1} parent=1 // loop_header
      %s19 = sphi 0, %s23
      %p20 = scmp.ge.s32.totalorder %s19, 4
      %s29 = sphi 0, %s31
      %s32 = sphi 0, %s29
      %s33 = sphi 0, %s32
      %s49 = sphi 0, %s33
      %s53 = sphi 0, %s53
      %s55 = sphi 0, %s53
      %s56 = sphi 0, %s55
      %s70 = sphi 0, %s56
      %s74 = sphi 0, %s74
      %s76 = sphi 0, %s74
      %s77 = sphi 0, %s76
      %s91 = sphi 0, %s77
      %s95 = sphi 0, %s95
      %s97 = sphi 0, %s95
      %s98 = sphi 0, %s97
      %s112 = sphi 0, %s98
      %s116 = sphi 0, %s116
      %s118 = sphi 0, %s116
      %s119 = sphi 0, %s118
      %s133 = sphi 0, %s119
      %s139 = sphi 0, %s141
      %s142 = sphi 0, %s139
      %s143 = sphi 0, %s142
      %s159 = sphi 0, %s143
    $region4: #{tpu_custom_call.1} parent=1 // loop_header_branch
      %22 = sbr.rel (%p20) target = $region8
    $region5: #{tpu_custom_call.1} parent=1 // loop_body
      %s24 = ssub.s32 %s19, 1
      %s25 = ssub.s32 %s19, 2
      %s26 = sadd.s32 %s19, 1
      %s27 = ssub.s32 %s19, %s26
      %p28 = scmp.eq.s32.totalorder %s27, 0
      %s30 = sadd.s32 %s29, 1
      %s31 = scalar_select %p28, %s29, %s30
      %p34 = pneg %p28
      %p35 = scmp.eq.s32.totalorder %s19, 1
      %p36 = por %p34, %p35
      %p37 = scmp.ne.s32.totalorder %s29, %s32
      %p38 = scmp.eq.s32.totalorder %s19, 0
      %p39 = por %p37, %p38
      %p40 = scmp.ne.s32.totalorder %s29, %s32
      %p41 = scmp.eq.s32.totalorder %s24, 1
      %p42 = por %p40, %p41
      %p43 = scmp.ne.s32.totalorder %s32, %s33
      %p44 = scmp.eq.s32.totalorder %s24, 0
      %p45 = por %p43, %p44
      %p46 = scmp.ne.s32.totalorder %s32, %s33
      %p47 = scmp.eq.s32.totalorder %s25, 1
      %p48 = por %p46, %p47
      %p50 = scmp.ne.s32.totalorder %s33, %s49
      %p51 = scmp.eq.s32.totalorder %s25, 0
      %p52 = por %p50, %p51
      %s54 = sadd.s32 %s53, 1
      %p57 = scmp.eq.s32.totalorder %s19, 1
      %p58 = scmp.ne.s32.totalorder %s53, %s55
      %p59 = scmp.eq.s32.totalorder %s19, 0
      %p60 = por %p58, %p59
      %p61 = scmp.ne.s32.totalorder %s53, %s55
      %p62 = scmp.eq.s32.totalorder %s24, 1
      %p63 = por %p61, %p62
      %p64 = scmp.ne.s32.totalorder %s55, %s56
      %p65 = scmp.eq.s32.totalorder %s24, 0
      %p66 = por %p64, %p65
      %p67 = scmp.ne.s32.totalorder %s55, %s56
      %p68 = scmp.eq.s32.totalorder %s25, 1
      %p69 = por %p67, %p68
      %p71 = scmp.ne.s32.totalorder %s56, %s70
      %p72 = scmp.eq.s32.totalorder %s25, 0
      %p73 = por %p71, %p72
      %s75 = sadd.s32 %s74, 1
      %p78 = scmp.eq.s32.totalorder %s19, 1
      %p79 = scmp.ne.s32.totalorder %s74, %s76
      %p80 = scmp.eq.s32.totalorder %s19, 0
      %p81 = por %p79, %p80
      %p82 = scmp.ne.s32.totalorder %s74, %s76
      %p83 = scmp.eq.s32.totalorder %s24, 1
      %p84 = por %p82, %p83
      %p85 = scmp.ne.s32.totalorder %s76, %s77
      %p86 = scmp.eq.s32.totalorder %s24, 0
      %p87 = por %p85, %p86
      %p88 = scmp.ne.s32.totalorder %s76, %s77
      %p89 = scmp.eq.s32.totalorder %s25, 1
      %p90 = por %p88, %p89
      %p92 = scmp.ne.s32.totalorder %s77, %s91
      %p93 = scmp.eq.s32.totalorder %s25, 0
      %p94 = por %p92, %p93
      %s96 = sadd.s32 %s95, 1
      %p99 = scmp.eq.s32.totalorder %s19, 1
      %p100 = scmp.ne.s32.totalorder %s95, %s97
      %p101 = scmp.eq.s32.totalorder %s19, 0
      %p102 = por %p100, %p101
      %p103 = scmp.ne.s32.totalorder %s95, %s97
      %p104 = scmp.eq.s32.totalorder %s24, 1
      %p105 = por %p103, %p104
      %p106 = scmp.ne.s32.totalorder %s97, %s98
      %p107 = scmp.eq.s32.totalorder %s24, 0
      %p108 = por %p106, %p107
      %p109 = scmp.ne.s32.totalorder %s97, %s98
      %p110 = scmp.eq.s32.totalorder %s25, 1
      %p111 = por %p109, %p110
      %p113 = scmp.ne.s32.totalorder %s98, %s112
      %p114 = scmp.eq.s32.totalorder %s25, 0
      %p115 = por %p113, %p114
      %s117 = sadd.s32 %s116, 1
      %p120 = scmp.eq.s32.totalorder %s19, 1
      %p121 = scmp.ne.s32.totalorder %s116, %s118
      %p122 = scmp.eq.s32.totalorder %s19, 0
      %p123 = por %p121, %p122
      %p124 = scmp.ne.s32.totalorder %s116, %s118
      %p125 = scmp.eq.s32.totalorder %s24, 1
      %p126 = por %p124, %p125
      %p127 = scmp.ne.s32.totalorder %s118, %s119
      %p128 = scmp.eq.s32.totalorder %s24, 0
      %p129 = por %p127, %p128
      %p130 = scmp.ne.s32.totalorder %s118, %s119
      %p131 = scmp.eq.s32.totalorder %s25, 1
      %p132 = por %p130, %p131
      %p134 = scmp.ne.s32.totalorder %s119, %s133
      %p135 = scmp.eq.s32.totalorder %s25, 0
      %p136 = por %p134, %p135
      %s137 = ssub.s32 %s19, %s26
      %p138 = scmp.eq.s32.totalorder %s137, 0
      %s140 = sadd.s32 %s139, 1
      %s141 = scalar_select %p138, %s139, %s140
      %p144 = pneg %p138
      %p145 = scmp.eq.s32.totalorder %s19, 1
      %p146 = por %p144, %p145
      %p147 = scmp.ne.s32.totalorder %s139, %s142
      %p148 = scmp.eq.s32.totalorder %s19, 0
      %p149 = por %p147, %p148
      %p150 = scmp.ne.s32.totalorder %s139, %s142
      %p151 = scmp.eq.s32.totalorder %s24, 1
      %p152 = por %p150, %p151
      %p153 = scmp.ne.s32.totalorder %s142, %s143
      %p154 = scmp.eq.s32.totalorder %s24, 0
      %p155 = por %p153, %p154
      %p156 = scmp.ne.s32.totalorder %s142, %s143
      %p157 = scmp.eq.s32.totalorder %s25, 1
      %p158 = por %p156, %p157
      %p160 = scmp.ne.s32.totalorder %s143, %s159
      %p161 = scmp.eq.s32.totalorder %s25, 0
      %p162 = por %p160, %p161
      %p163 = scmp.le.s32.totalorder 1, %s19
      %p164 = scmp.lt.s32.totalorder %s19, 3
      %p165 = pnand %p163, %p164
      %p166 = pneg %p165
      // Predicated region
      $region9: #{tpu_custom_call.1} parent=5 // pred_check
        _
      $region10: #{tpu_custom_call.1} parent=5 // pred_check_branch
        %168 = sbr.rel (%p165) target = $region12
      $region11: #{tpu_custom_call.1} parent=5 // pred_region
        %s169 = ssub.s32 %s19, 1
        // Predicated region
        $region13: #{tpu_custom_call.1} parent=11 // pred_check
          %p170 = pneg %p66
        $region14: #{tpu_custom_call.1} parent=11 // pred_check_branch
          %172 = sbr.rel (%p170) target = $region16
        $region15: #{tpu_custom_call.1} parent=11 // pred_region
          %s174 = ssub.s32 2048, 2048
          %175 = vsyncadd [#allocation6], %s174
          %s176 = sshll.u32 [#allocation5], 4
          %s177 = int_to_ptr.vmem [resolvable:$true] %s176
          %182 = dma.hbm_to_vmem [thread:$0]  %s1, 2048, %s177, [#allocation6], 128, 128, 8
        $region16: #{tpu_custom_call.1} parent=11 // pred_fallthru
          _
        // Predicated region
        $region17: #{tpu_custom_call.1} parent=11 // pred_check
          %p183 = pneg %p87
        $region18: #{tpu_custom_call.1} parent=11 // pred_check_branch
          %185 = sbr.rel (%p183) target = $region20
        $region19: #{tpu_custom_call.1} parent=11 // pred_region
          %s187 = ssub.s32 2048, 2048
          %188 = vsyncadd [#allocation6], %s187
          %s189 = sshll.u32 [#allocation7], 4
          %s190 = int_to_ptr.vmem [resolvable:$true] %s189
          %195 = dma.hbm_to_vmem [thread:$0]  %s2, 2048, %s190, [#allocation6], 128, 128, 8
        $region20: #{tpu_custom_call.1} parent=11 // pred_fallthru
          _
        // Predicated region
        $region21: #{tpu_custom_call.1} parent=11 // pred_check
          %p196 = pneg %p108
        $region22: #{tpu_custom_call.1} parent=11 // pred_check_branch
          %198 = sbr.rel (%p196) target = $region24
        $region23: #{tpu_custom_call.1} parent=11 // pred_region
          %s200 = ssub.s32 2048, 2048
          %201 = vsyncadd [#allocation9], %s200
          %s202 = sshll.u32 [#allocation8], 4
          %s203 = int_to_ptr.vmem [resolvable:$true] %s202
          %208 = dma.hbm_to_vmem [thread:$0]  %s3, 2048, %s203, [#allocation9], 128, 128, 8
        $region24: #{tpu_custom_call.1} parent=11 // pred_fallthru
          _
        // Predicated region
        $region25: #{tpu_custom_call.1} parent=11 // pred_check
          %p209 = pneg %p129
        $region26: #{tpu_custom_call.1} parent=11 // pred_check_branch
          %211 = sbr.rel (%p209) target = $region28
        $region27: #{tpu_custom_call.1} parent=11 // pred_region
          _
        $region28: #{tpu_custom_call.1} parent=11 // pred_fallthru
          _
      $region12: #{tpu_custom_call.1} parent=5 // pred_fallthru
        _
      %p212 = scmp.lt.s32.totalorder %s19, 2
      // Predicated region
      $region29: #{tpu_custom_call.1} parent=5 // pred_check
        %p213 = pneg %p212
      $region30: #{tpu_custom_call.1} parent=5 // pred_check_branch
        %215 = sbr.rel (%p213) target = $region32
      $region31: #{tpu_custom_call.1} parent=5 // pred_region
        // Predicated region
        $region33: #{tpu_custom_call.1} parent=31 // pred_check
          %p216 = pneg %p39
        $region34: #{tpu_custom_call.1} parent=31 // pred_check_branch
          %218 = sbr.rel (%p216) target = $region36
        $region35: #{tpu_custom_call.1} parent=31 // pred_region
          %s219 = sand.u32 %s29, 1
          %s220 = scalar_lea.sflag [#allocation3], %s219
          %s221 = sand.u32 %s29, 1
          %s222 = smul.addr %s221, 8
          %s223 = scalar_lea.vmem [#allocation2], %s222
          %s225 = ssub.s32 128, 128
          %226 = vsyncadd %s220, %s225
          %s227 = smul.addr %s19, 128
          %s228 = scalar_lea.hbm %s0, %s227
          %s230 = sshll.u32 %s223, 4
          %s231 = int_to_ptr.vmem [resolvable:$true] %s230
          %233 = dma.hbm_to_vmem [thread:$0]  %s228, 128, %s231, %s220
        $region36: #{tpu_custom_call.1} parent=31 // pred_fallthru
          _
      $region32: #{tpu_custom_call.1} parent=5 // pred_fallthru
        _
      %p234 = scmp.le.s32.totalorder 1, %s19
      %p235 = scmp.lt.s32.totalorder %s19, 3
      %p236 = pnand %p234, %p235
      %p237 = pneg %p236
      // Predicated region
      $region37: #{tpu_custom_call.1} parent=5 // pred_check
        _
      $region38: #{tpu_custom_call.1} parent=5 // pred_check_branch
        %239 = sbr.rel (%p236) target = $region40
      $region39: #{tpu_custom_call.1} parent=5 // pred_region
        %s240 = ssub.s32 %s19, 1
        %s241 = sand.u32 %s32, 1
        %s242 = scalar_lea.sflag [#allocation3], %s241
        %s243 = sand.u32 %s32, 1
        %s244 = smul.addr %s243, 8
        %s245 = scalar_lea.vmem [#allocation2], %s244
        // Predicated region
        $region41: #{tpu_custom_call.1} parent=39 // pred_check
          %p246 = pneg %p45
        $region42: #{tpu_custom_call.1} parent=39 // pred_check_branch
          %248 = sbr.rel (%p246) target = $region44
        $region43: #{tpu_custom_call.1} parent=39 // pred_region
          %249 = dma.done %s242, 128
        $region44: #{tpu_custom_call.1} parent=39 // pred_fallthru
          _
        // Predicated region
        $region45: #{tpu_custom_call.1} parent=39 // pred_check
          %p250 = pneg %p66
        $region46: #{tpu_custom_call.1} parent=39 // pred_check_branch
          %252 = sbr.rel (%p250) target = $region48
        $region47: #{tpu_custom_call.1} parent=39 // pred_region
          %253 = dma.done [#allocation6], 2048
        $region48: #{tpu_custom_call.1} parent=39 // pred_fallthru
          _
        // Predicated region
        $region49: #{tpu_custom_call.1} parent=39 // pred_check
          %p254 = pneg %p87
        $region50: #{tpu_custom_call.1} parent=39 // pred_check_branch
          %256 = sbr.rel (%p254) target = $region52
        $region51: #{tpu_custom_call.1} parent=39 // pred_region
          %257 = dma.done [#allocation6], 2048
        $region52: #{tpu_custom_call.1} parent=39 // pred_fallthru
          _
        // Predicated region
        $region53: #{tpu_custom_call.1} parent=39 // pred_check
          %p258 = pneg %p108
        $region54: #{tpu_custom_call.1} parent=39 // pred_check_branch
          %260 = sbr.rel (%p258) target = $region56
        $region55: #{tpu_custom_call.1} parent=39 // pred_region
          %261 = dma.done [#allocation9], 2048
        $region56: #{tpu_custom_call.1} parent=39 // pred_fallthru
          _
        %s262 = sand.u32 %s32, 1
        %s263 = scalar_lea.sflag [#allocation3], %s262
        %s264 = sand.u32 %s32, 1
        %s265 = smul.addr %s264, 8
        %s266 = scalar_lea.vmem [#allocation2], %s265
        %p267 = pneg %p45
        %p268 = pneg %p42
        %p269 = pneg %p66
        %p270 = pneg %p63
        %p271 = pneg %p87
        %p272 = pneg %p84
        %p273 = pneg %p108
        %p274 = pneg %p105
        %p275 = pneg %p129
        %p276 = pneg %p126
        %p277 = pneg %p155
        %p278 = pneg %p152
        %s279 = sand.u32 %s142, 1
        %s280 = scalar_lea.sflag [#allocation4], %s279
        %s281 = sand.u32 %s142, 1
        %s282 = smul.addr %s281, 8
        %s283 = scalar_lea.vmem [#allocation10], %s282
        %v284 = vld [vmem:[%s245] sm:$0xff]
        %v285 = vld [vmem:[#allocation5] sm:$0xff]
        %v286 = vld [vmem:[#allocation5 + $0x8] sm:$0xff]
        %v287 = vld [vmem:[#allocation5 + $0x10] sm:$0xff]
        %v288 = vld [vmem:[#allocation5 + $0x18] sm:$0xff]
        %v289 = vld [vmem:[#allocation5 + $0x20] sm:$0xff]
        %v290 = vld [vmem:[#allocation5 + $0x28] sm:$0xff]
        %v291 = vld [vmem:[#allocation5 + $0x30] sm:$0xff]
        %v292 = vld [vmem:[#allocation5 + $0x38] sm:$0xff]
        %v293 = vld [vmem:[#allocation5 + $0x40] sm:$0xff]
        %v294 = vld [vmem:[#allocation5 + $0x48] sm:$0xff]
        %v295 = vld [vmem:[#allocation5 + $0x50] sm:$0xff]
        %v296 = vld [vmem:[#allocation5 + $0x58] sm:$0xff]
        %v297 = vld [vmem:[#allocation5 + $0x60] sm:$0xff]
        %v298 = vld [vmem:[#allocation5 + $0x68] sm:$0xff]
        %v299 = vld [vmem:[#allocation5 + $0x70] sm:$0xff]
        %v300 = vld [vmem:[#allocation5 + $0x78] sm:$0xff]
        %v301 = vld [vmem:[#allocation7] sm:$0xff]
        %v302 = vld [vmem:[#allocation7 + $0x8] sm:$0xff]
        %v303 = vld [vmem:[#allocation7 + $0x10] sm:$0xff]
        %v304 = vld [vmem:[#allocation7 + $0x18] sm:$0xff]
        %v305 = vld [vmem:[#allocation7 + $0x20] sm:$0xff]
        %v306 = vld [vmem:[#allocation7 + $0x28] sm:$0xff]
        %v307 = vld [vmem:[#allocation7 + $0x30] sm:$0xff]
        %v308 = vld [vmem:[#allocation7 + $0x38] sm:$0xff]
        %v309 = vld [vmem:[#allocation7 + $0x40] sm:$0xff]
        %v310 = vld [vmem:[#allocation7 + $0x48] sm:$0xff]
        %v311 = vld [vmem:[#allocation7 + $0x50] sm:$0xff]
        %v312 = vld [vmem:[#allocation7 + $0x58] sm:$0xff]
        %v313 = vld [vmem:[#allocation7 + $0x60] sm:$0xff]
        %v314 = vld [vmem:[#allocation7 + $0x68] sm:$0xff]
        %v315 = vld [vmem:[#allocation7 + $0x70] sm:$0xff]
        %v316 = vld [vmem:[#allocation7 + $0x78] sm:$0xff]
        %317 = vmatprep.subr.mxu0 0.0
        %318 = vmatpush1.msra.mxu0 %v301
        %319 = vmatprep.subr.mxu0 0.0
        %320 = vmatpush1.msra.mxu0 %v302
        %321 = vmatprep.subr.mxu0 0.0
        %322 = vmatpush1.msra.mxu0 %v303
        %323 = vmatprep.subr.mxu0 0.0
        %324 = vmatpush1.msra.mxu0 %v304
        %325 = vmatprep.subr.mxu0 0.0
        %326 = vmatpush1.msra.mxu0 %v305
        %327 = vmatprep.subr.mxu0 0.0
        %328 = vmatpush1.msra.mxu0 %v306
        %329 = vmatprep.subr.mxu0 0.0
        %330 = vmatpush1.msra.mxu0 %v307
        %331 = vmatprep.subr.mxu0 0.0
        %332 = vmatpush1.msra.mxu0 %v308
        %333 = vmatprep.subr.mxu0 0.0
        %334 = vmatpush1.msra.mxu0 %v309
        %335 = vmatprep.subr.mxu0 0.0
        %336 = vmatpush1.msra.mxu0 %v310
        %337 = vmatprep.subr.mxu0 0.0
        %338 = vmatpush1.msra.mxu0 %v311
        %339 = vmatprep.subr.mxu0 0.0
        %340 = vmatpush1.msra.mxu0 %v312
        %341 = vmatprep.subr.mxu0 0.0
        %342 = vmatpush1.msra.mxu0 %v313
        %343 = vmatprep.subr.mxu0 0.0
        %344 = vmatpush1.msra.mxu0 %v314
        %345 = vmatprep.subr.mxu0 0.0
        %346 = vmatpush1.msra.mxu0 %v315
        %347 = vmatprep.subr.mxu0 0.0
        %348 = vmatpush1.msra.mxu0 %v316
        %349 = vmatprep.subr.mxu0 0.0
        %350 = vmatpush1.msra.mxu0 0.0
        %351 = vmatprep.subr.mxu0 0.0
        %352 = vmatpush1.msra.mxu0 0.0
        %353 = vmatprep.subr.mxu0 0.0
        %354 = vmatpush1.msra.mxu0 0.0
        %355 = vmatprep.subr.mxu0 0.0
        %356 = vmatpush1.msra.mxu0 0.0
        %357 = vmatprep.subr.mxu0 0.0
        %358 = vmatpush1.msra.mxu0 0.0
        %359 = vmatprep.subr.mxu0 0.0
        %360 = vmatpush1.msra.mxu0 0.0
        %361 = vmatprep.subr.mxu0 0.0
        %362 = vmatpush1.msra.mxu0 0.0
        %363 = vmatprep.subr.mxu0 0.0
        %364 = vmatpush1.msra.mxu0 0.0
        %365 = vmatprep.subr.mxu0 0.0
        %366 = vmatpush1.msra.mxu0 0.0
        %367 = vmatprep.subr.mxu0 0.0
        %368 = vmatpush1.msra.mxu0 0.0
        %369 = vmatprep.subr.mxu0 0.0
        %370 = vmatpush1.msra.mxu0 0.0
        %371 = vmatprep.subr.mxu0 0.0
        %372 = vmatpush1.msra.mxu0 0.0
        %373 = vmatprep.subr.mxu0 0.0
        %374 = vmatpush1.msra.mxu0 0.0
        %375 = vmatprep.subr.mxu0 0.0
        %376 = vmatpush1.msra.mxu0 0.0
        %377 = vmatprep.subr.mxu0 0.0
        %378 = vmatpush1.msra.mxu0 0.0
        %379 = vmatprep.subr.mxu0 0.0
        %380 = vmatpush1.msra.mxu0 0.0
        %381 = vmatprep.mubr.f32.mxu0 0.0
        %382 = vmatmul.mubr.f32.gmra.mrb[0].mxu0 %v284
        %v383 = vpop.f32.mrb[0].mxu0
        %v384 = vadd.f32 0.0, %v383
        %v385 = vpop.f32.mrb[0].mxu0
        %386 = vdwg.mxu0
        %v387 = vld [vmem:[#allocation8] sm:$0xff]
        %v388 = vld [vmem:[#allocation8 + $0x8] sm:$0xff]
        %v389 = vld [vmem:[#allocation8 + $0x10] sm:$0xff]
        %v390 = vld [vmem:[#allocation8 + $0x18] sm:$0xff]
        %v391 = vld [vmem:[#allocation8 + $0x20] sm:$0xff]
        %v392 = vld [vmem:[#allocation8 + $0x28] sm:$0xff]
        %v393 = vld [vmem:[#allocation8 + $0x30] sm:$0xff]
        %v394 = vld [vmem:[#allocation8 + $0x38] sm:$0xff]
        %v395 = vld [vmem:[#allocation8 + $0x40] sm:$0xff]
        %v396 = vld [vmem:[#allocation8 + $0x48] sm:$0xff]
        %v397 = vld [vmem:[#allocation8 + $0x50] sm:$0xff]
        %v398 = vld [vmem:[#allocation8 + $0x58] sm:$0xff]
        %v399 = vld [vmem:[#allocation8 + $0x60] sm:$0xff]
        %v400 = vld [vmem:[#allocation8 + $0x68] sm:$0xff]
        %v401 = vld [vmem:[#allocation8 + $0x70] sm:$0xff]
        %v402 = vld [vmem:[#allocation8 + $0x78] sm:$0xff]
        %403 = vmatprep.subr.mxu0 0.0
        %404 = vmatpush1.msra.mxu0 %v387
        %405 = vmatprep.subr.mxu0 0.0
        %406 = vmatpush1.msra.mxu0 %v388
        %407 = vmatprep.subr.mxu0 0.0
        %408 = vmatpush1.msra.mxu0 %v389
        %409 = vmatprep.subr.mxu0 0.0
        %410 = vmatpush1.msra.mxu0 %v390
        %411 = vmatprep.subr.mxu0 0.0
        %412 = vmatpush1.msra.mxu0 %v391
        %413 = vmatprep.subr.mxu0 0.0
        %414 = vmatpush1.msra.mxu0 %v392
        %415 = vmatprep.subr.mxu0 0.0
        %416 = vmatpush1.msra.mxu0 %v393
        %417 = vmatprep.subr.mxu0 0.0
        %418 = vmatpush1.msra.mxu0 %v394
        %419 = vmatprep.subr.mxu0 0.0
        %420 = vmatpush1.msra.mxu0 %v395
        %421 = vmatprep.subr.mxu0 0.0
        %422 = vmatpush1.msra.mxu0 %v396
        %423 = vmatprep.subr.mxu0 0.0
        %424 = vmatpush1.msra.mxu0 %v397
        %425 = vmatprep.subr.mxu0 0.0
        %426 = vmatpush1.msra.mxu0 %v398
        %427 = vmatprep.subr.mxu0 0.0
        %428 = vmatpush1.msra.mxu0 %v399
        %429 = vmatprep.subr.mxu0 0.0
        %430 = vmatpush1.msra.mxu0 %v400
        %431 = vmatprep.subr.mxu0 0.0
        %432 = vmatpush1.msra.mxu0 %v401
        %433 = vmatprep.subr.mxu0 0.0
        %434 = vmatpush1.msra.mxu0 %v402
        %435 = vmatprep.subr.mxu0 0.0
        %436 = vmatpush1.msra.mxu0 0.0
        %437 = vmatprep.subr.mxu0 0.0
        %438 = vmatpush1.msra.mxu0 0.0
        %439 = vmatprep.subr.mxu0 0.0
        %440 = vmatpush1.msra.mxu0 0.0
        %441 = vmatprep.subr.mxu0 0.0
        %442 = vmatpush1.msra.mxu0 0.0
        %443 = vmatprep.subr.mxu0 0.0
        %444 = vmatpush1.msra.mxu0 0.0
        %445 = vmatprep.subr.mxu0 0.0
        %446 = vmatpush1.msra.mxu0 0.0
        %447 = vmatprep.subr.mxu0 0.0
        %448 = vmatpush1.msra.mxu0 0.0
        %449 = vmatprep.subr.mxu0 0.0
        %450 = vmatpush1.msra.mxu0 0.0
        %451 = vmatprep.subr.mxu0 0.0
        %452 = vmatpush1.msra.mxu0 0.0
        %453 = vmatprep.subr.mxu0 0.0
        %454 = vmatpush1.msra.mxu0 0.0
        %455 = vmatprep.subr.mxu0 0.0
        %456 = vmatpush1.msra.mxu0 0.0
        %457 = vmatprep.subr.mxu0 0.0
        %458 = vmatpush1.msra.mxu0 0.0
        %459 = vmatprep.subr.mxu0 0.0
        %460 = vmatpush1.msra.mxu0 0.0
        %461 = vmatprep.subr.mxu0 0.0
        %462 = vmatpush1.msra.mxu0 0.0
        %463 = vmatprep.subr.mxu0 0.0
        %464 = vmatpush1.msra.mxu0 0.0
        %465 = vmatprep.subr.mxu0 0.0
        %466 = vmatpush1.msra.mxu0 0.0
        %467 = vmatprep.mubr.f32.mxu0 0.0
        %468 = vmatmul.mubr.f32.gmra.mrb[0].mxu0 %v384
        %v469 = vpop.f32.mrb[0].mxu0
        %v470 = vadd.f32 0.0, %v469
        %v471 = vpop.f32.mrb[0].mxu0
        %472 = vdwg.mxu0
        %473 = vmatprep.subr.mxu0 0.0
        %474 = vmatpush1.msra.mxu0 %v285
        %475 = vmatprep.subr.mxu0 0.0
        %476 = vmatpush1.msra.mxu0 %v286
        %477 = vmatprep.subr.mxu0 0.0
        %478 = vmatpush1.msra.mxu0 %v287
        %479 = vmatprep.subr.mxu0 0.0
        %480 = vmatpush1.msra.mxu0 %v288
        %481 = vmatprep.subr.mxu0 0.0
        %482 = vmatpush1.msra.mxu0 %v289
        %483 = vmatprep.subr.mxu0 0.0
        %484 = vmatpush1.msra.mxu0 %v290
        %485 = vmatprep.subr.mxu0 0.0
        %486 = vmatpush1.msra.mxu0 %v291
        %487 = vmatprep.subr.mxu0 0.0
        %488 = vmatpush1.msra.mxu0 %v292
        %489 = vmatprep.subr.mxu0 0.0
        %490 = vmatpush1.msra.mxu0 %v293
        %491 = vmatprep.subr.mxu0 0.0
        %492 = vmatpush1.msra.mxu0 %v294
        %493 = vmatprep.subr.mxu0 0.0
        %494 = vmatpush1.msra.mxu0 %v295
        %495 = vmatprep.subr.mxu0 0.0
        %496 = vmatpush1.msra.mxu0 %v296
        %497 = vmatprep.subr.mxu0 0.0
        %498 = vmatpush1.msra.mxu0 %v297
        %499 = vmatprep.subr.mxu0 0.0
        %500 = vmatpush1.msra.mxu0 %v298
        %501 = vmatprep.subr.mxu0 0.0
        %502 = vmatpush1.msra.mxu0 %v299
        %503 = vmatprep.subr.mxu0 0.0
        %504 = vmatpush1.msra.mxu0 %v300
        %505 = vmatprep.subr.mxu0 0.0
        %506 = vmatpush1.msra.mxu0 0.0
        %507 = vmatprep.subr.mxu0 0.0
        %508 = vmatpush1.msra.mxu0 0.0
        %509 = vmatprep.subr.mxu0 0.0
        %510 = vmatpush1.msra.mxu0 0.0
        %511 = vmatprep.subr.mxu0 0.0
        %512 = vmatpush1.msra.mxu0 0.0
        %513 = vmatprep.subr.mxu0 0.0
        %514 = vmatpush1.msra.mxu0 0.0
        %515 = vmatprep.subr.mxu0 0.0
        %516 = vmatpush1.msra.mxu0 0.0
        %517 = vmatprep.subr.mxu0 0.0
        %518 = vmatpush1.msra.mxu0 0.0
        %519 = vmatprep.subr.mxu0 0.0
        %520 = vmatpush1.msra.mxu0 0.0
        %521 = vmatprep.subr.mxu0 0.0
        %522 = vmatpush1.msra.mxu0 0.0
        %523 = vmatprep.subr.mxu0 0.0
        %524 = vmatpush1.msra.mxu0 0.0
        %525 = vmatprep.subr.mxu0 0.0
        %526 = vmatpush1.msra.mxu0 0.0
        %527 = vmatprep.subr.mxu0 0.0
        %528 = vmatpush1.msra.mxu0 0.0
        %529 = vmatprep.subr.mxu0 0.0
        %530 = vmatpush1.msra.mxu0 0.0
        %531 = vmatprep.subr.mxu0 0.0
        %532 = vmatpush1.msra.mxu0 0.0
        %533 = vmatprep.subr.mxu0 0.0
        %534 = vmatpush1.msra.mxu0 0.0
        %535 = vmatprep.subr.mxu0 0.0
        %536 = vmatpush1.msra.mxu0 0.0
        %537 = vmatprep.mubr.f32.mxu0 0.0
        %538 = vmatmul.mubr.f32.gmra.mrb[0].mxu0 %v284
        %v539 = vpop.f32.mrb[0].mxu0
        %v540 = vadd.f32 %v470, %v539
        %v541 = vpop.f32.mrb[0].mxu0
        %542 = vdwg.mxu0
        %v543 = vld [vmem:[%s4] sm:$0x1]
        %v545 = vlaneseq
        %v546 = vshrl.u32 %v545, 7
        %v547 = vsub.s32 0, %v546
        %v548 = vrot.slane %v543, %v547
        %v550 = vadd.f32 %v540, %v548
        %551 = vst [vmem:[%s283] sm:$0xff] %v550
        %s552 = sand.u32 %s142, 1
        %s553 = scalar_lea.sflag [#allocation4], %s552
        %s554 = sand.u32 %s142, 1
        %s555 = smul.addr %s554, 8
        %s556 = scalar_lea.vmem [#allocation10], %s555
        // Predicated region
        $region57: #{tpu_custom_call.1} parent=39 // pred_check
          %p557 = pneg %p152
        $region58: #{tpu_custom_call.1} parent=39 // pred_check_branch
          %559 = sbr.rel (%p557) target = $region60
        $region59: #{tpu_custom_call.1} parent=39 // pred_region
          %s561 = ssub.s32 128, 128
          %562 = vsyncadd %s553, %s561
          %s563 = smul.addr %s24, 128
          %s564 = scalar_lea.hbm %s5, %s563
          %s566 = sshll.u32 %s556, 4
          %s567 = int_to_ptr.vmem [resolvable:$true] %s566
          %569 = dma.vmem_to_hbm [thread:$0]  %s567, 128, %s564, %s553
        $region60: #{tpu_custom_call.1} parent=39 // pred_fallthru
          _
      $region40: #{tpu_custom_call.1} parent=5 // pred_fallthru
        _
      %p570 = scmp.le.s32.totalorder 2, %s19
      // Predicated region
      $region61: #{tpu_custom_call.1} parent=5 // pred_check
        %p571 = pneg %p570
      $region62: #{tpu_custom_call.1} parent=5 // pred_check_branch
        %573 = sbr.rel (%p571) target = $region64
      $region63: #{tpu_custom_call.1} parent=5 // pred_region
        %s574 = ssub.s32 %s19, 2
        // Predicated region
        $region65: #{tpu_custom_call.1} parent=63 // pred_check
          %p575 = pneg %p158
        $region66: #{tpu_custom_call.1} parent=63 // pred_check_branch
          %577 = sbr.rel (%p575) target = $region68
        $region67: #{tpu_custom_call.1} parent=63 // pred_region
          %s578 = sand.u32 %s143, 1
          %s579 = scalar_lea.sflag [#allocation4], %s578
          %s580 = sand.u32 %s143, 1
          %s581 = smul.addr %s580, 8
          %s582 = scalar_lea.vmem [#allocation10], %s581
          %583 = dma.done %s579, 128
        $region68: #{tpu_custom_call.1} parent=63 // pred_fallthru
          _
      $region64: #{tpu_custom_call.1} parent=5 // pred_fallthru
        _
    $region6: #{tpu_custom_call.1} parent=1 // loop_footer
      %s23 = sadd.s32 1, %s19
    $region7: #{tpu_custom_call.1} parent=1 // loop_footer_branch
      %18 = sbr.rel target = $region3
    $region8: #{tpu_custom_call.1} parent=1 // loop_exit
      _
    %584 = vsyncpa [#allocation3], 1
    %s585 = scalar_lea.sflag [#allocation3], 1
    %586 = vsyncpa %s585, 1
    %587 = vsyncpa [#allocation6], 1
    %588 = vsyncpa [#allocation9], 1
    %589 = vsyncpa [#allocation4], 1
    %s590 = scalar_lea.sflag [#allocation4], 1
    %591 = vsyncpa %s590, 1

</llo_original>
